<compile_context>
chip_gen: v7x
topology: tpu7x:2x2x1
jax: 0.10.0
libtpu: 0.0.40
codegen_flags: <defaults>
</compile_context>

<pallas_src>
import functools

import jax
import jax.numpy as jnp
from jax import lax
from jax.experimental import pallas as pl
from jax.experimental.pallas import tpu as pltpu


def _shift_kernel(x_ref, out_ref, *, ksize, pad, h, w):
    """One (batch, channel-block) grid step.

    x_ref:   (1, C_BLK, H*W)       input channels, spatial flattened on lanes.
    out_ref: (1, C_BLK, K*K*H*W)   row cc, lanes [j*HW, (j+1)*HW) = output
                                   channel cc*K*K + j (row-major identical to
                                   the NCHW output).
    """
    hw = h * w
    xf = x_ref[0]                                        # (C_BLK, HW)

    # Flat spatial index p = y*W + x along lanes (built once per step; tiny).
    pos = lax.broadcasted_iota(jnp.int32, (1, hw), 1)
    if w > 0 and (w & (w - 1)) == 0:
        col = pos & (w - 1)                              # x coordinate (W pow2)
    else:
        col = pos % w                                    # general W

    for dy in range(ksize):
        sy = dy - pad
        for dx in range(ksize):
            sx = dx - pad
            j = dy * ksize + dx
            off = sy * w + sx                            # flattened source offset

            if off % hw == 0:
                rolled = xf
            else:
                # rolled[:, p] = xf[:, (p + off) % hw]; wrapped / row-crossing
                # positions are zeroed by the validity mask below.  XLU work,
                # off the store-slot critical path.
                rolled = pltpu.roll(xf, (-off) % hw, axis=1)

            # Source (y+sy, x+sx) must lie inside the H x W image.  The row
            # test needs no division: y < h-sy  <=>  p < (h-sy)*w, etc.
            conds = []
            if sy > 0:
                conds.append(pos < (h - sy) * w)
            elif sy < 0:
                conds.append(pos >= (-sy) * w)
            if sx > 0:
                conds.append(col < (w - sx))
            elif sx < 0:
                conds.append(col >= -sx)

            if conds:
                valid = conds[0]
                for cnd in conds[1:]:
                    valid = valid & cnd
                plane = jnp.where(valid, rolled, jnp.zeros_like(rolled))
            else:
                plane = rolled                           # center tap: plain copy

            # Dense, lane-aligned slab store: one contiguous (C_BLK, HW) write
            # per tap (fully unmasked vsts when HW % 128 == 0).
            out_ref[0, :, j * hw:(j + 1) * hw] = plane.astype(out_ref.dtype)


def _pick_channel_block(n, c, kk, hw, itemsize,
                        block_budget_bytes=4 * 1024 * 1024,
                        target_out_bytes=1 * 1024 * 1024,
                        min_steps=8):
    """Channel block size: layout-friendly (multiple of 8 or full C), in+out
    block under a ~4 MiB budget (double-buffered fits v7x's 64 MiB VMEM with
    headroom), per-step output DMA >= ~1 MiB where possible, and enough grid
    steps to feed v7x's two TensorCores."""
    per_channel = (1 + kk) * hw * itemsize          # input row + K*K output lanes
    out_per_channel = kk * hw * itemsize
    cands = sorted({c} | {cb for cb in range(8, c + 1, 8) if c % cb == 0})
    fits = [cb for cb in cands if cb * per_channel <= block_budget_bytes]
    if not fits:
        # Smallest divisor; relies on the 32 MiB vmem_limit headroom.
        fits = [cands[0]]
    # Smallest block whose output DMA already amortizes the ~0.35 us step cost.
    big_enough = [cb for cb in fits if cb * out_per_channel >= target_out_bytes]
    pick = min(big_enough) if big_enough else max(fits)
    # Prefer several grid steps per TensorCore when we have the slack.
    while n * (c // pick) < min_steps:
        smaller = [cb for cb in fits if cb < pick]
        if not smaller:
            break
        pick = max(smaller)
    return pick


def shift_forward(x, kernel_size=3):
    n, c, h, w = x.shape
    pad = kernel_size // 2
    kk = kernel_size * kernel_size
    hw = h * w

    # Free, layout-preserving reshape: flatten (H, W) onto the lane axis.
    x3 = x.reshape(n, c, hw)

    c_blk = _pick_channel_block(n, c, kk, hw, jnp.dtype(x.dtype).itemsize)
    num_c_blocks = c // c_blk

    kernel = functools.partial(_shift_kernel, ksize=kernel_size, pad=pad,
                               h=h, w=w)

    out3 = pl.pallas_call(
        kernel,
        # (N, C, K*K*H*W): row-major identical to (N, C*K*K, H, W).
        out_shape=jax.ShapeDtypeStruct((n, c, kk * hw), x.dtype),
        grid_spec=pltpu.PrefetchScalarGridSpec(
            num_scalar_prefetch=0,
            grid=(n, num_c_blocks),
            in_specs=[
                pl.BlockSpec((1, c_blk, hw), lambda b, ci: (b, ci, 0)),
            ],
            out_specs=pl.BlockSpec((1, c_blk, kk * hw),
                                   lambda b, ci: (b, ci, 0)),
        ),
        compiler_params=pltpu.CompilerParams(
            # Both axes independent -> megacore / v7x's 2 TCs split the work.
            dimension_semantics=("parallel", "parallel"),
            vmem_limit_bytes=32 * 1024 * 1024,
        ),
    )(x3)

    # Free metadata reshape back to the NCHW layout of the PyTorch module.
    return out3.reshape(n, c * kk, h, w)


def shift_reference(x, kernel_size=3):
    """Pure-JAX reference reproducing the PyTorch forward exactly."""
    n, c, h, w = x.shape
    pad = kernel_size // 2
    xpad = jnp.pad(x, ((0, 0), (0, 0), (pad, pad), (pad, pad)))
    outs = []
    for i in range(c):
        for dy in range(kernel_size):
            for dx in range(kernel_size):
                outs.append(xpad[:, i:i + 1, dy:dy + h, dx:dx + w])
    return jnp.concatenate(outs, axis=1)


if __name__ == "__main__":
    key = jax.random.PRNGKey(0)
    # in_planes = 9, kernel_size = 3 (channels_per_group is unused in forward).
    n, c, h, w = 2, 9, 16, 16
    x = jax.random.normal(key, (n, c, h, w), dtype=jnp.float32)

    out = shift_forward(x, kernel_size=3)
    out = jax.block_until_ready(out)

    ref = shift_reference(x, kernel_size=3)
    assert out.shape == (n, c * 9, h, w), out.shape
    assert jnp.allclose(out, ref), "mismatch vs reference"

    print("KERNEL_OK")
</pallas_src>

<mosaic_0001>
module attributes {stable_mosaic.version = 11 : i64} {
  func.func @_shift_kernel(%arg0: i32, %arg1: i32, %arg2: memref<1x9x256xf32, #tpu.memory_space<vmem>>, %arg3: memref<1x9x2304xf32, #tpu.memory_space<vmem>>) attributes {dimension_semantics = [#tpu.dimension_semantics<parallel>, #tpu.dimension_semantics<parallel>], iteration_bounds = array<i64: 2, 1>, scalar_prefetch = 0 : i64, scratch_operands = 0 : i64, tpu.core_type = #tpu.core_type<tc>, window_params = [{transform_indices = @transform_0, window_bounds = array<i64: 1, 9, 256>}, {transform_indices = @transform_1, window_bounds = array<i64: 1, 9, 2304>}]} {
    %c0 = arith.constant 0 : index
    %c0_0 = arith.constant 0 : index
    %c0_1 = arith.constant 0 : index
    %0 = vector.load %arg2[%c0, %c0_0, %c0_1] : memref<1x9x256xf32, #tpu.memory_space<vmem>>, vector<1x9x256xf32>
    %1 = vector.shape_cast %0 : vector<1x9x256xf32> to vector<9x256xf32>
    %2 = tpu.iota {dimensions = array<i32: 1>} : vector<1x256xi32>
    %c15_i32 = arith.constant 15 : i32
    %3 = vector.broadcast %c15_i32 : i32 to vector<1x256xi32>
    %4 = arith.andi %2, %3 : vector<1x256xi32>
    %c17_i32 = arith.constant 17 : i32
    %5 = tpu.dynamic_rotate %1 by %c17_i32 dim 1 : vector<9x256xf32>, i32 -> vector<9x256xf32>
    %c16_i32 = arith.constant 16 : i32
    %6 = vector.broadcast %c16_i32 : i32 to vector<1x256xi32>
    %7 = arith.cmpi sge, %2, %6 : vector<1x256xi32>
    %c1_i32 = arith.constant 1 : i32
    %8 = vector.broadcast %c1_i32 : i32 to vector<1x256xi32>
    %9 = arith.cmpi sge, %4, %8 : vector<1x256xi32>
    %10 = arith.andi %7, %9 : vector<1x256xi1>
    %cst = arith.constant 0.000000e+00 : f32
    %11 = vector.broadcast %cst : f32 to vector<9x256xf32>
    %12 = vector.shape_cast %10 : vector<1x256xi1> to vector<1x256xi1>
    %13 = vector.broadcast %12 : vector<1x256xi1> to vector<9x256xi1>
    %14 = arith.select %13, %5, %11 : vector<9x256xi1>, vector<9x256xf32>
    %c0_2 = arith.constant 0 : index
    %c0_3 = arith.constant 0 : index
    %c0_4 = arith.constant 0 : index
    %15 = vector.load %arg3[%c0_2, %c0_3, %c0_4] : memref<1x9x2304xf32, #tpu.memory_space<vmem>>, vector<1x9x256xf32>
    %16 = vector.shape_cast %15 : vector<1x9x256xf32> to vector<9x256xf32>
    %17 = vector.shape_cast %14 : vector<9x256xf32> to vector<1x9x256xf32>
    tpu.vector_store %arg3[%c0_2, %c0_3, %c0_4], %17 {strides = array<i32>} : memref<1x9x2304xf32, #tpu.memory_space<vmem>>, vector<1x9x256xf32>,
    %c16_i32_5 = arith.constant 16 : i32
    %18 = tpu.dynamic_rotate %1 by %c16_i32_5 dim 1 : vector<9x256xf32>, i32 -> vector<9x256xf32>
    %c16_i32_6 = arith.constant 16 : i32
    %19 = vector.broadcast %c16_i32_6 : i32 to vector<1x256xi32>
    %20 = arith.cmpi sge, %2, %19 : vector<1x256xi32>
    %cst_7 = arith.constant 0.000000e+00 : f32
    %21 = vector.broadcast %cst_7 : f32 to vector<9x256xf32>
    %22 = vector.shape_cast %20 : vector<1x256xi1> to vector<1x256xi1>
    %23 = vector.broadcast %22 : vector<1x256xi1> to vector<9x256xi1>
    %24 = arith.select %23, %18, %21 : vector<9x256xi1>, vector<9x256xf32>
    %c0_8 = arith.constant 0 : index
    %c0_9 = arith.constant 0 : index
    %c256 = arith.constant 256 : index
    %25 = vector.load %arg3[%c0_8, %c0_9, %c256] : memref<1x9x2304xf32, #tpu.memory_space<vmem>>, vector<1x9x256xf32>
    %26 = vector.shape_cast %25 : vector<1x9x256xf32> to vector<9x256xf32>
    %27 = vector.shape_cast %24 : vector<9x256xf32> to vector<1x9x256xf32>
    tpu.vector_store %arg3[%c0_8, %c0_9, %c256], %27 {strides = array<i32>} : memref<1x9x2304xf32, #tpu.memory_space<vmem>>, vector<1x9x256xf32>,
    %c15_i32_10 = arith.constant 15 : i32
    %28 = tpu.dynamic_rotate %1 by %c15_i32_10 dim 1 : vector<9x256xf32>, i32 -> vector<9x256xf32>
    %c16_i32_11 = arith.constant 16 : i32
    %29 = vector.broadcast %c16_i32_11 : i32 to vector<1x256xi32>
    %30 = arith.cmpi sge, %2, %29 : vector<1x256xi32>
    %c15_i32_12 = arith.constant 15 : i32
    %31 = vector.broadcast %c15_i32_12 : i32 to vector<1x256xi32>
    %32 = arith.cmpi slt, %4, %31 : vector<1x256xi32>
    %33 = arith.andi %30, %32 : vector<1x256xi1>
    %cst_13 = arith.constant 0.000000e+00 : f32
    %34 = vector.broadcast %cst_13 : f32 to vector<9x256xf32>
    %35 = vector.shape_cast %33 : vector<1x256xi1> to vector<1x256xi1>
    %36 = vector.broadcast %35 : vector<1x256xi1> to vector<9x256xi1>
    %37 = arith.select %36, %28, %34 : vector<9x256xi1>, vector<9x256xf32>
    %c0_14 = arith.constant 0 : index
    %c0_15 = arith.constant 0 : index
    %c512 = arith.constant 512 : index
    %38 = vector.load %arg3[%c0_14, %c0_15, %c512] : memref<1x9x2304xf32, #tpu.memory_space<vmem>>, vector<1x9x256xf32>
    %39 = vector.shape_cast %38 : vector<1x9x256xf32> to vector<9x256xf32>
    %40 = vector.shape_cast %37 : vector<9x256xf32> to vector<1x9x256xf32>
    tpu.vector_store %arg3[%c0_14, %c0_15, %c512], %40 {strides = array<i32>} : memref<1x9x2304xf32, #tpu.memory_space<vmem>>, vector<1x9x256xf32>,
    %c1_i32_16 = arith.constant 1 : i32
    %41 = tpu.dynamic_rotate %1 by %c1_i32_16 dim 1 : vector<9x256xf32>, i32 -> vector<9x256xf32>
    %c1_i32_17 = arith.constant 1 : i32
    %42 = vector.broadcast %c1_i32_17 : i32 to vector<1x256xi32>
    %43 = arith.cmpi sge, %4, %42 : vector<1x256xi32>
    %cst_18 = arith.constant 0.000000e+00 : f32
    %44 = vector.broadcast %cst_18 : f32 to vector<9x256xf32>
    %45 = vector.shape_cast %43 : vector<1x256xi1> to vector<1x256xi1>
    %46 = vector.broadcast %45 : vector<1x256xi1> to vector<9x256xi1>
    %47 = arith.select %46, %41, %44 : vector<9x256xi1>, vector<9x256xf32>
    %c0_19 = arith.constant 0 : index
    %c0_20 = arith.constant 0 : index
    %c768 = arith.constant 768 : index
    %48 = vector.load %arg3[%c0_19, %c0_20, %c768] : memref<1x9x2304xf32, #tpu.memory_space<vmem>>, vector<1x9x256xf32>
    %49 = vector.shape_cast %48 : vector<1x9x256xf32> to vector<9x256xf32>
    %50 = vector.shape_cast %47 : vector<9x256xf32> to vector<1x9x256xf32>
    tpu.vector_store %arg3[%c0_19, %c0_20, %c768], %50 {strides = array<i32>} : memref<1x9x2304xf32, #tpu.memory_space<vmem>>, vector<1x9x256xf32>,
    %c0_21 = arith.constant 0 : index
    %c0_22 = arith.constant 0 : index
    %c1024 = arith.constant 1024 : index
    %51 = vector.load %arg3[%c0_21, %c0_22, %c1024] : memref<1x9x2304xf32, #tpu.memory_space<vmem>>, vector<1x9x256xf32>
    %52 = vector.shape_cast %51 : vector<1x9x256xf32> to vector<9x256xf32>
    %53 = vector.shape_cast %1 : vector<9x256xf32> to vector<1x9x256xf32>
    tpu.vector_store %arg3[%c0_21, %c0_22, %c1024], %53 {strides = array<i32>} : memref<1x9x2304xf32, #tpu.memory_space<vmem>>, vector<1x9x256xf32>,
    %c255_i32 = arith.constant 255 : i32
    %54 = tpu.dynamic_rotate %1 by %c255_i32 dim 1 : vector<9x256xf32>, i32 -> vector<9x256xf32>
    %c15_i32_23 = arith.constant 15 : i32
    %55 = vector.broadcast %c15_i32_23 : i32 to vector<1x256xi32>
    %56 = arith.cmpi slt, %4, %55 : vector<1x256xi32>
    %cst_24 = arith.constant 0.000000e+00 : f32
    %57 = vector.broadcast %cst_24 : f32 to vector<9x256xf32>
    %58 = vector.shape_cast %56 : vector<1x256xi1> to vector<1x256xi1>
    %59 = vector.broadcast %58 : vector<1x256xi1> to vector<9x256xi1>
    %60 = arith.select %59, %54, %57 : vector<9x256xi1>, vector<9x256xf32>
    %c0_25 = arith.constant 0 : index
    %c0_26 = arith.constant 0 : index
    %c1280 = arith.constant 1280 : index
    %61 = vector.load %arg3[%c0_25, %c0_26, %c1280] : memref<1x9x2304xf32, #tpu.memory_space<vmem>>, vector<1x9x256xf32>
    %62 = vector.shape_cast %61 : vector<1x9x256xf32> to vector<9x256xf32>
    %63 = vector.shape_cast %60 : vector<9x256xf32> to vector<1x9x256xf32>
    tpu.vector_store %arg3[%c0_25, %c0_26, %c1280], %63 {strides = array<i32>} : memref<1x9x2304xf32, #tpu.memory_space<vmem>>, vector<1x9x256xf32>,
    %c241_i32 = arith.constant 241 : i32
    %64 = tpu.dynamic_rotate %1 by %c241_i32 dim 1 : vector<9x256xf32>, i32 -> vector<9x256xf32>
    %c240_i32 = arith.constant 240 : i32
    %65 = vector.broadcast %c240_i32 : i32 to vector<1x256xi32>
    %66 = arith.cmpi slt, %2, %65 : vector<1x256xi32>
    %c1_i32_27 = arith.constant 1 : i32
    %67 = vector.broadcast %c1_i32_27 : i32 to vector<1x256xi32>
    %68 = arith.cmpi sge, %4, %67 : vector<1x256xi32>
    %69 = arith.andi %66, %68 : vector<1x256xi1>
    %cst_28 = arith.constant 0.000000e+00 : f32
    %70 = vector.broadcast %cst_28 : f32 to vector<9x256xf32>
    %71 = vector.shape_cast %69 : vector<1x256xi1> to vector<1x256xi1>
    %72 = vector.broadcast %71 : vector<1x256xi1> to vector<9x256xi1>
    %73 = arith.select %72, %64, %70 : vector<9x256xi1>, vector<9x256xf32>
    %c0_29 = arith.constant 0 : index
    %c0_30 = arith.constant 0 : index
    %c1536 = arith.constant 1536 : index
    %74 = vector.load %arg3[%c0_29, %c0_30, %c1536] : memref<1x9x2304xf32, #tpu.memory_space<vmem>>, vector<1x9x256xf32>
    %75 = vector.shape_cast %74 : vector<1x9x256xf32> to vector<9x256xf32>
    %76 = vector.shape_cast %73 : vector<9x256xf32> to vector<1x9x256xf32>
    tpu.vector_store %arg3[%c0_29, %c0_30, %c1536], %76 {strides = array<i32>} : memref<1x9x2304xf32, #tpu.memory_space<vmem>>, vector<1x9x256xf32>,
    %c240_i32_31 = arith.constant 240 : i32
    %77 = tpu.dynamic_rotate %1 by %c240_i32_31 dim 1 : vector<9x256xf32>, i32 -> vector<9x256xf32>
    %c240_i32_32 = arith.constant 240 : i32
    %78 = vector.broadcast %c240_i32_32 : i32 to vector<1x256xi32>
    %79 = arith.cmpi slt, %2, %78 : vector<1x256xi32>
    %cst_33 = arith.constant 0.000000e+00 : f32
    %80 = vector.broadcast %cst_33 : f32 to vector<9x256xf32>
    %81 = vector.shape_cast %79 : vector<1x256xi1> to vector<1x256xi1>
    %82 = vector.broadcast %81 : vector<1x256xi1> to vector<9x256xi1>
    %83 = arith.select %82, %77, %80 : vector<9x256xi1>, vector<9x256xf32>
    %c0_34 = arith.constant 0 : index
    %c0_35 = arith.constant 0 : index
    %c1792 = arith.constant 1792 : index
    %84 = vector.load %arg3[%c0_34, %c0_35, %c1792] : memref<1x9x2304xf32, #tpu.memory_space<vmem>>, vector<1x9x256xf32>
    %85 = vector.shape_cast %84 : vector<1x9x256xf32> to vector<9x256xf32>
    %86 = vector.shape_cast %83 : vector<9x256xf32> to vector<1x9x256xf32>
    tpu.vector_store %arg3[%c0_34, %c0_35, %c1792], %86 {strides = array<i32>} : memref<1x9x2304xf32, #tpu.memory_space<vmem>>, vector<1x9x256xf32>,
    %c239_i32 = arith.constant 239 : i32
    %87 = tpu.dynamic_rotate %1 by %c239_i32 dim 1 : vector<9x256xf32>, i32 -> vector<9x256xf32>
    %c240_i32_36 = arith.constant 240 : i32
    %88 = vector.broadcast %c240_i32_36 : i32 to vector<1x256xi32>
    %89 = arith.cmpi slt, %2, %88 : vector<1x256xi32>
    %c15_i32_37 = arith.constant 15 : i32
    %90 = vector.broadcast %c15_i32_37 : i32 to vector<1x256xi32>
    %91 = arith.cmpi slt, %4, %90 : vector<1x256xi32>
    %92 = arith.andi %89, %91 : vector<1x256xi1>
    %cst_38 = arith.constant 0.000000e+00 : f32
    %93 = vector.broadcast %cst_38 : f32 to vector<9x256xf32>
    %94 = vector.shape_cast %92 : vector<1x256xi1> to vector<1x256xi1>
    %95 = vector.broadcast %94 : vector<1x256xi1> to vector<9x256xi1>
    %96 = arith.select %95, %87, %93 : vector<9x256xi1>, vector<9x256xf32>
    %c0_39 = arith.constant 0 : index
    %c0_40 = arith.constant 0 : index
    %c2048 = arith.constant 2048 : index
    %97 = vector.load %arg3[%c0_39, %c0_40, %c2048] : memref<1x9x2304xf32, #tpu.memory_space<vmem>>, vector<1x9x256xf32>
    %98 = vector.shape_cast %97 : vector<1x9x256xf32> to vector<9x256xf32>
    %99 = vector.shape_cast %96 : vector<9x256xf32> to vector<1x9x256xf32>
    tpu.vector_store %arg3[%c0_39, %c0_40, %c2048], %99 {strides = array<i32>} : memref<1x9x2304xf32, #tpu.memory_space<vmem>>, vector<1x9x256xf32>,
    return
  }
  func.func @transform_0(%arg0: i32, %arg1: i32) -> (i32, i32, i32) {
    %c0_i32 = arith.constant 0 : i32
    %c0_i32_0 = arith.constant 0 : i32
    return %arg0, %arg1, %c0_i32 : i32, i32, i32
  }
  func.func @transform_1(%arg0: i32, %arg1: i32) -> (i32, i32, i32) {
    %c0_i32 = arith.constant 0 : i32
    %c0_i32_0 = arith.constant 0 : i32
    return %arg0, %arg1, %c0_i32 : i32, i32, i32
  }
}

</mosaic_0001>

<llo_original>
// kernel: tpu_custom_call.1
$region0: #{tpu_custom_call.1}
  #allocation0 [shape = 'u32[]', space=smem, size = 0x4, offset = 0x4, fixed_abs, tag = 'smem constant byte address 0x4 - core index']
  #allocation1 [shape = 'u32[144,128]{1,0:T(1,128)}', space=vmem, size = 0x12000, scoped, tag = 'internal scratch']
  %s0 = inlined_call_operand.vmem [shape: f32[2,9,256], index: 0, kind: input, shape index: {}]
  %s1 = inlined_call_operand.vmem [shape: f32[2,9,2304], index: 1, kind: output, shape index: {}]
  %s2 = sld [smem:[#allocation0]]
  $region37: #{tpu_custom_call.1} parent=0
    _
  %s4 = ssub.s32 1, %s2
  %s5 = scalar_select 0, %s4, %s2
  loop: start=0, step=1, limit=4
  $region2: #{tpu_custom_call.1} parent=0 // loop_pre_header
    _
  $region3: #{tpu_custom_call.1} parent=0 // loop_header
    %s7 = sphi 0, %s11
    %p8 = scmp.ge.s32.totalorder %s7, 4
    %s14 = sphi 0, %s26
    %s15 = sphi 0, %s22
    %s16 = sphi 0, %s14
    %s17 = sphi 0, %s15
    %s18 = sphi 0, %s16
    %s19 = sphi 0, %s17
    %s31 = sphi 0, %s33
    %s34 = sphi 0, %s31
    %s35 = sphi 0, %s34
    %s51 = sphi 0, %s35
    %s59 = sphi 0, %s61
    %s62 = sphi 0, %s59
    %s63 = sphi 0, %s62
    %s79 = sphi 0, %s63
  $region4: #{tpu_custom_call.1} parent=0 // loop_header_branch
    %10 = sbr.rel (%p8) target = $region8
  $region5: #{tpu_custom_call.1} parent=0 // loop_body
    %s12 = ssub.s32 %s7, 1
    %s13 = ssub.s32 %s7, 2
    %s20 = sadd.s32 1, %s15
    %p21 = scmp.ge.s32.totalorder %s20, 1
    %s22 = scalar_select %p21, 0, %s20
    %s23 = sadd.s32 1, %s14
    %s24 = scalar_select %p21, %s23, %s14
    %p25 = scmp.ge.s32.totalorder %s24, 2
    %s26 = scalar_select %p25, 0, %s24
    %s27 = ssub.s32 %s14, %s26
    %s28 = ssub.s32 %s15, %s22
    %s29 = sor.u32 %s27, %s28
    %p30 = scmp.eq.s32.totalorder %s29, 0
    %s32 = sadd.s32 %s31, 1
    %s33 = scalar_select %p30, %s31, %s32
    %p36 = pneg %p30
    %p37 = scmp.eq.s32.totalorder %s7, 1
    %p38 = por %p36, %p37
    %p39 = scmp.ne.s32.totalorder %s31, %s34
    %p40 = scmp.eq.s32.totalorder %s7, 0
    %p41 = por %p39, %p40
    %p42 = scmp.ne.s32.totalorder %s31, %s34
    %p43 = scmp.eq.s32.totalorder %s12, 1
    %p44 = por %p42, %p43
    %p45 = scmp.ne.s32.totalorder %s34, %s35
    %p46 = scmp.eq.s32.totalorder %s12, 0
    %p47 = por %p45, %p46
    %p48 = scmp.ne.s32.totalorder %s34, %s35
    %p49 = scmp.eq.s32.totalorder %s13, 1
    %p50 = por %p48, %p49
    %p52 = scmp.ne.s32.totalorder %s35, %s51
    %p53 = scmp.eq.s32.totalorder %s13, 0
    %p54 = por %p52, %p53
    %s55 = ssub.s32 %s14, %s26
    %s56 = ssub.s32 %s15, %s22
    %s57 = sor.u32 %s55, %s56
    %p58 = scmp.eq.s32.totalorder %s57, 0
    %s60 = sadd.s32 %s59, 1
    %s61 = scalar_select %p58, %s59, %s60
    %p64 = pneg %p58
    %p65 = scmp.eq.s32.totalorder %s7, 1
    %p66 = por %p64, %p65
    %p67 = scmp.ne.s32.totalorder %s59, %s62
    %p68 = scmp.eq.s32.totalorder %s7, 0
    %p69 = por %p67, %p68
    %p70 = scmp.ne.s32.totalorder %s59, %s62
    %p71 = scmp.eq.s32.totalorder %s12, 1
    %p72 = por %p70, %p71
    %p73 = scmp.ne.s32.totalorder %s62, %s63
    %p74 = scmp.eq.s32.totalorder %s12, 0
    %p75 = por %p73, %p74
    %p76 = scmp.ne.s32.totalorder %s62, %s63
    %p77 = scmp.eq.s32.totalorder %s13, 1
    %p78 = por %p76, %p77
    %p80 = scmp.ne.s32.totalorder %s63, %s79
    %p81 = scmp.eq.s32.totalorder %s13, 0
    %p82 = por %p80, %p81
    %p83 = scmp.le.s32.totalorder 1, %s7
    %p84 = scmp.lt.s32.totalorder %s7, 3
    %p85 = pnand %p83, %p84
    %p86 = pneg %p85
    // Predicated region
    $region9: #{tpu_custom_call.1} parent=5 // pred_check
      _
    $region10: #{tpu_custom_call.1} parent=5 // pred_check_branch
      %88 = sbr.rel (%p85) target = $region12
    $region11: #{tpu_custom_call.1} parent=5 // pred_region
      %s89 = ssub.s32 %s7, 1
    $region12: #{tpu_custom_call.1} parent=5 // pred_fallthru
      _
    %p90 = scmp.lt.s32.totalorder %s7, 2
    // Predicated region
    $region13: #{tpu_custom_call.1} parent=5 // pred_check
      %p91 = pneg %p90
    $region14: #{tpu_custom_call.1} parent=5 // pred_check_branch
      %93 = sbr.rel (%p91) target = $region16
    $region15: #{tpu_custom_call.1} parent=5 // pred_region
      // Predicated region
      $region17: #{tpu_custom_call.1} parent=15 // pred_check
        %p94 = pneg %p41
      $region18: #{tpu_custom_call.1} parent=15 // pred_check_branch
        %96 = sbr.rel (%p94) target = $region20
      $region19: #{tpu_custom_call.1} parent=15 // pred_region
        %s97 = smul.u32 2, %s15
        %p98 = scmp.lt.s32.totalorder %s14, 1
        %s99 = scalar_select %p98, %s14, 1
        %p100 = scmp.lt.s32.totalorder %s97, 1
        %s101 = scalar_select %p100, %s97, 1
        %s102 = smul.addr %s101, 2
        %s103 = smul.addr %s99, 4
        %s104 = sadd.s32 %s102, %s103
        %s105 = smul.addr %s104, 8
        %s106 = scalar_lea.vmem %s0, %s105
        %s107 = smul.u32 2, %s15
      $region20: #{tpu_custom_call.1} parent=15 // pred_fallthru
        _
    $region16: #{tpu_custom_call.1} parent=5 // pred_fallthru
      _
    %p108 = scmp.le.s32.totalorder 1, %s7
    %p109 = scmp.lt.s32.totalorder %s7, 3
    %p110 = pnand %p108, %p109
    %p111 = pneg %p110
    // Predicated region
    $region21: #{tpu_custom_call.1} parent=5 // pred_check
      _
    $region22: #{tpu_custom_call.1} parent=5 // pred_check_branch
      %113 = sbr.rel (%p110) target = $region24
    $region23: #{tpu_custom_call.1} parent=5 // pred_region
      %s114 = ssub.s32 %s7, 1
      %s115 = smul.u32 2, %s17
      %p116 = scmp.lt.s32.totalorder %s16, 1
      %s117 = scalar_select %p116, %s16, 1
      %p118 = scmp.lt.s32.totalorder %s115, 1
      %s119 = scalar_select %p118, %s115, 1
      %s120 = smul.addr %s119, 2
      %s121 = smul.addr %s117, 4
      %s122 = sadd.s32 %s120, %s121
      %s123 = smul.addr %s122, 8
      %s124 = scalar_lea.vmem %s0, %s123
      %p125 = pneg %p47
      %p126 = pneg %p44
      %p127 = pneg %p75
      %p128 = pneg %p72
      %s129 = smul.u32 2, %s17
      %p130 = scmp.lt.s32.totalorder %s16, 1
      %s131 = scalar_select %p130, %s16, 1
      %p132 = scmp.lt.s32.totalorder %s129, 1
      %s133 = scalar_select %p132, %s129, 1
      %s134 = smul.addr %s133, 18
      %s135 = smul.addr %s131, 36
      %s136 = sadd.s32 %s134, %s135
      %s137 = smul.addr %s136, 8
      %s138 = scalar_lea.vmem %s1, %s137
      %s139 = smul.u32 2, %s17
      %p140 = scmp.lt.s32.totalorder %s16, 1
      %s141 = scalar_select %p140, %s16, 1
      %p142 = scmp.lt.s32.totalorder %s139, 1
      %s143 = scalar_select %p142, %s139, 1
      %s144 = smul.addr %s143, 2
      %s145 = smul.addr %s141, 4
      %s146 = sadd.s32 %s144, %s145
      %s147 = smul.addr %s146, 8
      %s148 = scalar_lea.vmem %s0, %s147
      %s149 = smul.u32 2, %s17
      %s150 = smul.u32 2, %s17
      %p151 = scmp.lt.s32.totalorder %s16, 1
      %s152 = scalar_select %p151, %s16, 1
      %p153 = scmp.lt.s32.totalorder %s150, 1
      %s154 = scalar_select %p153, %s150, 1
      %s155 = smul.addr %s154, 18
      %s156 = smul.addr %s152, 36
      %s157 = sadd.s32 %s155, %s156
      %s158 = smul.addr %s157, 8
      %s159 = scalar_lea.vmem %s1, %s158
      %s160 = smul.u32 2, %s17
      %v161 = vld [vmem:[%s148] sm:$0xff]
      %v162 = vld [vmem:[%s148 + $0x8] sm:$0xff]
      %v163 = vld [vmem:[%s148 + $0x10] sm:$0x1]
      %v164 = vld [vmem:[%s148 + $0x18] sm:$0x1]
      %v165 = vlaneseq
      %v166 = vand.u32 %v165, 127
      %v167 = vadd.s32 %v166, 128
      %v168 = vand.u32 %v166, 15
      %v169 = vand.u32 %v167, 15
      %170 = vrot.lane.b32.xlu0 %v161, 17
      %v171 = vpop.permute.xlu0 %170
      %172 = vrot.lane.b32.xlu0 %v163, 17
      %v173 = vpop.permute.xlu0 %172
      %174 = vrot.lane.b32.xlu0 %v162, 17
      %v175 = vpop.permute.xlu0 %174
      %176 = vrot.lane.b32.xlu0 %v164, 17
      %v177 = vpop.permute.xlu0 %176
      %vm178 = vcmp.lt.s32.totalorder %v166, 17
      %v179 = vsel %vm178, %v171, %v175
      %v180 = vsel %vm178, %v173, %v177
      %v181 = vsel %vm178, %v175, %v171
      %v182 = vsel %vm178, %v177, %v173
      %vm183 = vcmp.ge.s32.totalorder %v166, 16
      %vm184 = vcmp.ge.s32.totalorder %v167, 16
      %vm185 = vcmp.ge.s32.totalorder %v168, 1
      %vm186 = vcmp.ge.s32.totalorder %v169, 1
      %vm187 = vmand %vm183, %vm185
      %vm188 = vmand %vm184, %vm186
      %v189 = vsel %vm187, 1, 0
      %v190 = vsel %vm188, 1, 0
      %vm191 = vcmp.eq.s32.totalorder %v189, 1
      %vm192 = vcmp.eq.s32.totalorder %v190, 1
      %v193 = vsel %vm191, %v181, 0.0
      %v194 = vsel %vm192, %v179, 0.0
      %v195 = vsel %vm191, %v182, 0.0
      %v196 = vsel %vm192, %v180, 0.0
      %197 = vst [vmem:[%s159] sm:$0xff] %v193
      %198 = vst [vmem:[%s159 + $0x8] sm:$0xff] %v194
      %199 = vst [vmem:[%s159 + $0x90] sm:$0x1] %v195
      %200 = vst [vmem:[%s159 + $0x98] sm:$0x1] %v196
      %201 = vrot.lane.b32.xlu0 %v161, 16
      %v202 = vpop.permute.xlu0 %201
      %203 = vrot.lane.b32.xlu0 %v163, 16
      %v204 = vpop.permute.xlu0 %203
      %205 = vrot.lane.b32.xlu0 %v162, 16
      %v206 = vpop.permute.xlu0 %205
      %207 = vrot.lane.b32.xlu0 %v164, 16
      %v208 = vpop.permute.xlu0 %207
      %vm209 = vcmp.lt.s32.totalorder %v166, 16
      %v210 = vsel %vm209, %v202, %v206
      %v211 = vsel %vm209, %v204, %v208
      %v212 = vsel %vm209, %v206, %v202
      %v213 = vsel %vm209, %v208, %v204
      %v214 = vsel %vm183, 1, 0
      %v215 = vsel %vm184, 1, 0
      %vm216 = vcmp.eq.s32.totalorder %v214, 1
      %vm217 = vcmp.eq.s32.totalorder %v215, 1
      %v218 = vsel %vm216, %v212, 0.0
      %v219 = vsel %vm217, %v210, 0.0
      %v220 = vsel %vm216, %v213, 0.0
      %v221 = vsel %vm217, %v211, 0.0
      %222 = vst [vmem:[%s159 + $0x10] sm:$0xff] %v218
      %223 = vst [vmem:[%s159 + $0x18] sm:$0xff] %v219
      %224 = vst [vmem:[%s159 + $0xa0] sm:$0x1] %v220
      %225 = vst [vmem:[%s159 + $0xa8] sm:$0x1] %v221
      %226 = vrot.lane.b32.xlu0 %v161, 15
      %v227 = vpop.permute.xlu0 %226
      %228 = vrot.lane.b32.xlu0 %v163, 15
      %v229 = vpop.permute.xlu0 %228
      %230 = vrot.lane.b32.xlu0 %v162, 15
      %v231 = vpop.permute.xlu0 %230
      %232 = vrot.lane.b32.xlu0 %v164, 15
      %v233 = vpop.permute.xlu0 %232
      %vm234 = vcmp.lt.s32.totalorder %v166, 15
      %v235 = vsel %vm234, %v227, %v231
      %v236 = vsel %vm234, %v229, %v233
      %v237 = vsel %vm234, %v231, %v227
      %v238 = vsel %vm234, %v233, %v229
      %vm239 = vcmp.lt.s32.totalorder %v168, 15
      %vm240 = vcmp.lt.s32.totalorder %v169, 15
      %vm241 = vmand %vm183, %vm239
      %vm242 = vmand %vm184, %vm240
      %v243 = vsel %vm241, 1, 0
      %v244 = vsel %vm242, 1, 0
      %vm245 = vcmp.eq.s32.totalorder %v243, 1
      %vm246 = vcmp.eq.s32.totalorder %v244, 1
      %v247 = vsel %vm245, %v237, 0.0
      %v248 = vsel %vm246, %v235, 0.0
      %v249 = vsel %vm245, %v238, 0.0
      %v250 = vsel %vm246, %v236, 0.0
      %251 = vst [vmem:[%s159 + $0x20] sm:$0xff] %v247
      %252 = vst [vmem:[%s159 + $0x28] sm:$0xff] %v248
      %253 = vst [vmem:[%s159 + $0xb0] sm:$0x1] %v249
      %254 = vst [vmem:[%s159 + $0xb8] sm:$0x1] %v250
      %255 = vrot.lane.b32.xlu0 %v161, 1
      %v256 = vpop.permute.xlu0 %255
      %257 = vrot.lane.b32.xlu0 %v163, 1
      %v258 = vpop.permute.xlu0 %257
      %259 = vrot.lane.b32.xlu0 %v162, 1
      %v260 = vpop.permute.xlu0 %259
      %261 = vrot.lane.b32.xlu0 %v164, 1
      %v262 = vpop.permute.xlu0 %261
      %vm263 = vcmp.lt.s32.totalorder %v166, 1
      %v264 = vsel %vm263, %v256, %v260
      %v265 = vsel %vm263, %v258, %v262
      %v266 = vsel %vm263, %v260, %v256
      %v267 = vsel %vm263, %v262, %v258
      %v268 = vsel %vm185, 1, 0
      %v269 = vsel %vm186, 1, 0
      %vm270 = vcmp.eq.s32.totalorder %v268, 1
      %vm271 = vcmp.eq.s32.totalorder %v269, 1
      %v272 = vsel %vm270, %v266, 0.0
      %v273 = vsel %vm271, %v264, 0.0
      %v274 = vsel %vm270, %v267, 0.0
      %v275 = vsel %vm271, %v265, 0.0
      %276 = vst [vmem:[%s159 + $0x30] sm:$0xff] %v272
      %277 = vst [vmem:[%s159 + $0x38] sm:$0xff] %v273
      %278 = vst [vmem:[%s159 + $0xc0] sm:$0x1] %v274
      %279 = vst [vmem:[%s159 + $0xc8] sm:$0x1] %v275
      %280 = vst [vmem:[%s159 + $0x40] sm:$0xff] %v161
      %281 = vst [vmem:[%s159 + $0x48] sm:$0xff] %v162
      %282 = vst [vmem:[%s159 + $0xd0] sm:$0x1] %v163
      %283 = vst [vmem:[%s159 + $0xd8] sm:$0x1] %v164
      %284 = vrot.lane.b32.xlu0 %v161, 127
      %v285 = vpop.permute.xlu0 %284
      %286 = vrot.lane.b32.xlu0 %v163, 127
      %v287 = vpop.permute.xlu0 %286
      %288 = vrot.lane.b32.xlu0 %v162, 127
      %v289 = vpop.permute.xlu0 %288
      %290 = vrot.lane.b32.xlu0 %v164, 127
      %v291 = vpop.permute.xlu0 %290
      %vm292 = vcmp.lt.s32.totalorder %v166, 127
      %v293 = vsel %vm292, %v285, %v289
      %v294 = vsel %vm292, %v287, %v291
      %v295 = vsel %vm292, %v289, %v285
      %v296 = vsel %vm292, %v291, %v287
      %v297 = vsel %vm239, 1, 0
      %v298 = vsel %vm240, 1, 0
      %vm299 = vcmp.eq.s32.totalorder %v297, 1
      %vm300 = vcmp.eq.s32.totalorder %v298, 1
      %v301 = vsel %vm299, %v293, 0.0
      %v302 = vsel %vm300, %v295, 0.0
      %v303 = vsel %vm299, %v294, 0.0
      %v304 = vsel %vm300, %v296, 0.0
      %305 = vst [vmem:[%s159 + $0x50] sm:$0xff] %v301
      %306 = vst [vmem:[%s159 + $0x58] sm:$0xff] %v302
      %307 = vst [vmem:[%s159 + $0xe0] sm:$0x1] %v303
      %308 = vst [vmem:[%s159 + $0xe8] sm:$0x1] %v304
      %309 = vrot.lane.b32.xlu0 %v161, 113
      %v310 = vpop.permute.xlu0 %309
      %311 = vrot.lane.b32.xlu0 %v163, 113
      %v312 = vpop.permute.xlu0 %311
      %313 = vrot.lane.b32.xlu0 %v162, 113
      %v314 = vpop.permute.xlu0 %313
      %315 = vrot.lane.b32.xlu0 %v164, 113
      %v316 = vpop.permute.xlu0 %315
      %vm317 = vcmp.lt.s32.totalorder %v166, 113
      %v318 = vsel %vm317, %v310, %v314
      %v319 = vsel %vm317, %v312, %v316
      %v320 = vsel %vm317, %v314, %v310
      %v321 = vsel %vm317, %v316, %v312
      %vm322 = vcmp.lt.s32.totalorder %v166, 240
      %vm323 = vcmp.lt.s32.totalorder %v167, 240
      %vm324 = vmand %vm322, %vm185
      %vm325 = vmand %vm323, %vm186
      %v326 = vsel %vm324, 1, 0
      %v327 = vsel %vm325, 1, 0
      %vm328 = vcmp.eq.s32.totalorder %v326, 1
      %vm329 = vcmp.eq.s32.totalorder %v327, 1
      %v330 = vsel %vm328, %v318, 0.0
      %v331 = vsel %vm329, %v320, 0.0
      %v332 = vsel %vm328, %v319, 0.0
      %v333 = vsel %vm329, %v321, 0.0
      %334 = vst [vmem:[%s159 + $0x60] sm:$0xff] %v330
      %335 = vst [vmem:[%s159 + $0x68] sm:$0xff] %v331
      %336 = vst [vmem:[%s159 + $0xf0] sm:$0x1] %v332
      %337 = vst [vmem:[%s159 + $0xf8] sm:$0x1] %v333
      %338 = vrot.lane.b32.xlu0 %v161, 112
      %v339 = vpop.permute.xlu0 %338
      %340 = vrot.lane.b32.xlu0 %v163, 112
      %v341 = vpop.permute.xlu0 %340
      %342 = vrot.lane.b32.xlu0 %v162, 112
      %v343 = vpop.permute.xlu0 %342
      %344 = vrot.lane.b32.xlu0 %v164, 112
      %v345 = vpop.permute.xlu0 %344
      %vm346 = vcmp.lt.s32.totalorder %v166, 112
      %v347 = vsel %vm346, %v339, %v343
      %v348 = vsel %vm346, %v341, %v345
      %v349 = vsel %vm346, %v343, %v339
      %v350 = vsel %vm346, %v345, %v341
      %v351 = vsel %vm322, 1, 0
      %v352 = vsel %vm323, 1, 0
      %vm353 = vcmp.eq.s32.totalorder %v351, 1
      %vm354 = vcmp.eq.s32.totalorder %v352, 1
      %v355 = vsel %vm353, %v347, 0.0
      %v356 = vsel %vm354, %v349, 0.0
      %v357 = vsel %vm353, %v348, 0.0
      %v358 = vsel %vm354, %v350, 0.0
      %359 = vst [vmem:[%s159 + $0x70] sm:$0xff] %v355
      %360 = vst [vmem:[%s159 + $0x78] sm:$0xff] %v356
      %361 = vst [vmem:[%s159 + $0x100] sm:$0x1] %v357
      %362 = vst [vmem:[%s159 + $0x108] sm:$0x1] %v358
      %363 = vrot.lane.b32.xlu0 %v161, 111
      %v364 = vpop.permute.xlu0 %363
      %365 = vrot.lane.b32.xlu0 %v163, 111
      %v366 = vpop.permute.xlu0 %365
      %367 = vrot.lane.b32.xlu0 %v162, 111
      %v368 = vpop.permute.xlu0 %367
      %369 = vrot.lane.b32.xlu0 %v164, 111
      %v370 = vpop.permute.xlu0 %369
      %vm371 = vcmp.lt.s32.totalorder %v166, 111
      %v372 = vsel %vm371, %v364, %v368
      %v373 = vsel %vm371, %v366, %v370
      %v374 = vsel %vm371, %v368, %v364
      %v375 = vsel %vm371, %v370, %v366
      %vm376 = vmand %vm322, %vm239
      %vm377 = vmand %vm323, %vm240
      %v378 = vsel %vm376, 1, 0
      %v379 = vsel %vm377, 1, 0
      %vm380 = vcmp.eq.s32.totalorder %v378, 1
      %vm381 = vcmp.eq.s32.totalorder %v379, 1
      %v382 = vsel %vm380, %v372, 0.0
      %v383 = vsel %vm381, %v374, 0.0
      %v384 = vsel %vm380, %v373, 0.0
      %v385 = vsel %vm381, %v375, 0.0
      %386 = vst [vmem:[%s159 + $0x80] sm:$0xff] %v382
      %387 = vst [vmem:[%s159 + $0x88] sm:$0xff] %v383
      %388 = vst [vmem:[%s159 + $0x110] sm:$0x1] %v384
      %389 = vst [vmem:[%s159 + $0x118] sm:$0x1] %v385
      %s390 = smul.u32 2, %s17
      %p391 = scmp.lt.s32.totalorder %s16, 1
      %s392 = scalar_select %p391, %s16, 1
      %p393 = scmp.lt.s32.totalorder %s390, 1
      %s394 = scalar_select %p393, %s390, 1
      %s395 = smul.addr %s394, 18
      %s396 = smul.addr %s392, 36
      %s397 = sadd.s32 %s395, %s396
      %s398 = smul.addr %s397, 8
      %s399 = scalar_lea.vmem %s1, %s398
      // Predicated region
      $region25: #{tpu_custom_call.1} parent=23 // pred_check
        %p400 = pneg %p72
      $region26: #{tpu_custom_call.1} parent=23 // pred_check_branch
        %402 = sbr.rel (%p400) target = $region28
      $region27: #{tpu_custom_call.1} parent=23 // pred_region
        %s403 = smul.u32 2, %s17
      $region28: #{tpu_custom_call.1} parent=23 // pred_fallthru
        _
    $region24: #{tpu_custom_call.1} parent=5 // pred_fallthru
      _
    %p404 = scmp.le.s32.totalorder 2, %s7
    // Predicated region
    $region29: #{tpu_custom_call.1} parent=5 // pred_check
      %p405 = pneg %p404
    $region30: #{tpu_custom_call.1} parent=5 // pred_check_branch
      %407 = sbr.rel (%p405) target = $region32
    $region31: #{tpu_custom_call.1} parent=5 // pred_region
      %s408 = ssub.s32 %s7, 2
      // Predicated region
      $region33: #{tpu_custom_call.1} parent=31 // pred_check
        %p409 = pneg %p78
      $region34: #{tpu_custom_call.1} parent=31 // pred_check_branch
        %411 = sbr.rel (%p409) target = $region36
      $region35: #{tpu_custom_call.1} parent=31 // pred_region
        %s412 = smul.u32 2, %s19
        %p413 = scmp.lt.s32.totalorder %s18, 1
        %s414 = scalar_select %p413, %s18, 1
        %p415 = scmp.lt.s32.totalorder %s412, 1
        %s416 = scalar_select %p415, %s412, 1
        %s417 = smul.addr %s416, 18
        %s418 = smul.addr %s414, 36
        %s419 = sadd.s32 %s417, %s418
        %s420 = smul.addr %s419, 8
        %s421 = scalar_lea.vmem %s1, %s420
      $region36: #{tpu_custom_call.1} parent=31 // pred_fallthru
        _
    $region32: #{tpu_custom_call.1} parent=5 // pred_fallthru
      _
  $region6: #{tpu_custom_call.1} parent=0 // loop_footer
    %s11 = sadd.s32 1, %s7
  $region7: #{tpu_custom_call.1} parent=0 // loop_footer_branch
    %6 = sbr.rel target = $region3
  $region8: #{tpu_custom_call.1} parent=0 // loop_exit
    _

</llo_original>
